<compile_context>
chip_gen: v7x
topology: tpu7x:2x2x1
jax: 0.10.0
libtpu: 0.0.40
codegen_flags: <defaults>
</compile_context>

<pallas_src>
import functools

import jax
import jax.numpy as jnp
from jax.experimental import pallas as pl
from jax.experimental.pallas import tpu as pltpu


def _round_up(x: int, m: int) -> int:
    return ((x + m - 1) // m) * m


# ---------------------------------------------------------------------------
# Path 1: small vocab -- one-hot @ table on the MXU, table VMEM-resident.
# ---------------------------------------------------------------------------
def _onehot_embed_kernel(ids_ref, table_ref, out_ref, *, group):
    # ids_ref:   (rows_blk, group) int32  -- `group` token ids per output row
    # table_ref: (V, E)                   -- full table, VMEM-resident
    # out_ref:   (rows_blk, group * E)    -- lane-dense output block
    table = table_ref[...]                                   # (V, E)
    ids = ids_ref[...]                                       # (rows_blk, group)
    rows = ids.shape[0]
    vocab = table.shape[0]
    lane_iota = jax.lax.broadcasted_iota(jnp.int32, (rows, vocab), 1)

    pieces = []
    for g in range(group):                                   # static, small
        onehot = (ids[:, g:g + 1] == lane_iota).astype(table.dtype)  # (rows, V)
        pieces.append(
            jnp.dot(onehot, table, preferred_element_type=jnp.float32)
        )                                                    # (rows, E)
    emb = pieces[0] if group == 1 else jnp.concatenate(pieces, axis=-1)
    out_ref[...] = emb.astype(out_ref.dtype)


def _embed_onehot(ids_flat, table, t_blk):
    n = ids_flat.shape[0]
    vocab, embed = table.shape

    # Pack `group` tokens per output row so the stored block is >= 128 lanes
    # wide (unmasked vst instead of masked partial stores).
    group = 128 // embed if (embed < 128 and 128 % embed == 0) else 1
    base = 8 * group                       # keeps rows_blk a multiple of 8

    # Large token blocks amortize per-grid-step overhead; clamp to the padded
    # problem size so tiny inputs run as a single grid step.
    t_blk = max(base, min(_round_up(t_blk, base), _round_up(n, base)))
    n_pad = _round_up(n, t_blk)            # cdiv-style padding, no assert

    ids_pad = jnp.pad(ids_flat, (0, n_pad - n))              # pad id 0 (valid)
    rows_total = n_pad // group
    rows_blk = t_blk // group
    ids_grouped = ids_pad.reshape(rows_total, group)

    out = pl.pallas_call(
        functools.partial(_onehot_embed_kernel, group=group),
        out_shape=jax.ShapeDtypeStruct((rows_total, group * embed), table.dtype),
        grid=(n_pad // t_blk,),
        in_specs=[
            # Token-id block (for the big-vocab path ids live in SMEM instead).
            pl.BlockSpec((rows_blk, group), lambda i: (i, 0)),
            # Full table in VMEM, NOT pipelined: a blocked spec with a constant
            # index_map would still reserve 2x the table for double buffering.
            pl.BlockSpec(memory_space=pltpu.MemorySpace.VMEM),
        ],
        out_specs=pl.BlockSpec((rows_blk, group * embed), lambda i: (i, 0)),
        compiler_params=pltpu.CompilerParams(
            # Independent token blocks -> shard across v7x's 2 TensorCores.
            dimension_semantics=("parallel",),
        ),
    )(ids_grouped, table)

    # (rows_total, group*E) row-major is bit-identical memory to (n_pad, E).
    return out.reshape(n_pad, embed)[:n]


# ---------------------------------------------------------------------------
# Path 2: realistic vocab -- scalar-prefetch row gather (memory-bound path).
# ---------------------------------------------------------------------------
def _gather_kernel(ids_smem_ref, row_ref, out_ref):
    # ids_smem_ref: (N,) int32 in SMEM (scalar prefetch); consumed only by the
    #               index_maps.
    del ids_smem_ref
    out_ref[...] = row_ref[...]            # copy one gathered (1, 1, E) row


def _embed_gather(ids_flat, table):
    n = ids_flat.shape[0]
    vocab, embed = table.shape
    table3 = table.reshape(vocab, 1, embed)   # free reshape; keeps block dims
                                              # equal to full trailing dims

    grid_spec = pltpu.PrefetchScalarGridSpec(
        num_scalar_prefetch=1,
        grid=(n,),
        in_specs=[
            # One embedding row per grid step, row index read from the
            # prefetched ids in SMEM: HBM traffic is only N*E elements and the
            # table never needs to fit in VMEM (v7x: 64 MiB).
            pl.BlockSpec((1, 1, embed), lambda i, ids: (ids[i], 0, 0)),
        ],
        out_specs=pl.BlockSpec((1, 1, embed), lambda i, ids: (i, 0, 0)),
    )
    out = pl.pallas_call(
        _gather_kernel,
        out_shape=jax.ShapeDtypeStruct((n, 1, embed), table.dtype),
        grid_spec=grid_spec,
        compiler_params=pltpu.CompilerParams(
            dimension_semantics=("parallel",),
        ),
    )(ids_flat, table3)
    return out.reshape(n, embed)


# ---------------------------------------------------------------------------
# Public wrapper == TokenEmbedding.forward (segment_label is unused upstream).
# ---------------------------------------------------------------------------
def token_embedding(sequence, table, *, t_blk=512, path=None):
    batch, seq = sequence.shape
    vocab, embed = table.shape

    # TODO(synk): nn.Embedding raises on out-of-range ids; here they are
    # clamped to [0, vocab-1] instead of erroring (valid ids are unaffected).
    ids_flat = jnp.clip(sequence.reshape(-1).astype(jnp.int32), 0, vocab - 1)

    if path is None:
        table_bytes = vocab * embed * table.dtype.itemsize
        path = "onehot" if (vocab <= 512 and table_bytes <= 2 * 1024 * 1024) else "gather"

    if path == "onehot":
        out_flat = _embed_onehot(ids_flat, table, t_blk)
    else:
        out_flat = _embed_gather(ids_flat, table)

    return out_flat.reshape(batch, seq, embed)


if __name__ == "__main__":
    # Module hyper-params (synthetic, small).
    vocab_size = 32
    embed_size = 32
    B, S = 2, 8

    key = jax.random.PRNGKey(0)
    k_tab, k_seq, k_tab2, k_seq2 = jax.random.split(key, 4)

    # nn.Embedding default init: weight ~ N(0, 1), shape (vocab, embed).
    table = jax.random.normal(k_tab, (vocab_size, embed_size), dtype=jnp.float32)
    sequence = jax.random.randint(k_seq, (B, S), 0, vocab_size, dtype=jnp.int32)

    # Small-vocab path: single grid step, lane-dense (8, 128) output block.
    out = jax.block_until_ready(token_embedding(sequence, table))
    ref = jnp.take(table, sequence, axis=0)
    assert out.shape == (B, S, embed_size)
    assert jnp.allclose(out, ref, atol=1e-6), "onehot path mismatch vs gather ref"

    # Also exercise the realistic-vocab scalar-prefetch gather path (small scale).
    V2, E2 = 1024, 128
    table2 = jax.random.normal(k_tab2, (V2, E2), dtype=jnp.float32)
    seq2 = jax.random.randint(k_seq2, (B, S), 0, V2, dtype=jnp.int32)
    out2 = jax.block_until_ready(token_embedding(seq2, table2, path="gather"))
    ref2 = jnp.take(table2, seq2, axis=0)
    assert out2.shape == (B, S, E2)
    assert jnp.allclose(out2, ref2), "gather path mismatch vs gather ref"

    print("KERNEL_OK")
</pallas_src>

<mosaic_0001>
module attributes {stable_mosaic.version = 11 : i64} {
  func.func @_onehot_embed_kernel(%arg0: i32, %arg1: memref<8x4xi32, #tpu.memory_space<vmem>>, %arg2: memref<32x32xf32, #tpu.memory_space<vmem>>, %arg3: memref<8x128xf32, #tpu.memory_space<vmem>>) attributes {dimension_semantics = [#tpu.dimension_semantics<parallel>], iteration_bounds = array<i64: 1>, scalar_prefetch = 0 : i64, scratch_operands = 0 : i64, tpu.core_type = #tpu.core_type<tc>, window_params = [{transform_indices = @transform_0, window_bounds = array<i64: 8, 4>}, {pipeline_mode = #tpu.pipeline_mode<synchronous>, transform_indices = @transform_1, window_bounds = array<i64: 32, 32>}, {transform_indices = @transform_2, window_bounds = array<i64: 8, 128>}]} {
    %c0 = arith.constant 0 : index
    %c0_0 = arith.constant 0 : index
    %0 = vector.load %arg2[%c0, %c0_0] : memref<32x32xf32, #tpu.memory_space<vmem>>, vector<32x32xf32>
    %c0_1 = arith.constant 0 : index
    %c0_2 = arith.constant 0 : index
    %1 = vector.load %arg1[%c0_1, %c0_2] : memref<8x4xi32, #tpu.memory_space<vmem>>, vector<8x4xi32>
    %2 = tpu.iota {dimensions = array<i32: 1>} : vector<8x32xi32>
    %3 = vector.extract_strided_slice %1 {offsets = [0, 0], sizes = [8, 1], strides = [1, 1]} : vector<8x4xi32> to vector<8x1xi32>
    %4 = vector.broadcast %3 : vector<8x1xi32> to vector<8x32xi32>
    %5 = arith.cmpi eq, %4, %2 : vector<8x32xi32>
    %6 = arith.extui %5 : vector<8x32xi1> to vector<8x32xi32>
    %7 = arith.sitofp %6 : vector<8x32xi32> to vector<8x32xf32>
    %cst = arith.constant dense<0.000000e+00> : vector<8x32xf32>
    %8 = tpu.matmul %7, %0, %cst {dimension_numbers = #tpu.dot_dimension_numbers<[1], [0], [0], [1], [0, 0, 1, 1], [], []>} : vector<8x32xf32>, vector<32x32xf32>, vector<8x32xf32> -> vector<8x32xf32>
    %9 = vector.extract_strided_slice %1 {offsets = [0, 1], sizes = [8, 1], strides = [1, 1]} : vector<8x4xi32> to vector<8x1xi32>
    %10 = vector.broadcast %9 : vector<8x1xi32> to vector<8x32xi32>
    %11 = arith.cmpi eq, %10, %2 : vector<8x32xi32>
    %12 = arith.extui %11 : vector<8x32xi1> to vector<8x32xi32>
    %13 = arith.sitofp %12 : vector<8x32xi32> to vector<8x32xf32>
    %cst_3 = arith.constant dense<0.000000e+00> : vector<8x32xf32>
    %14 = tpu.matmul %13, %0, %cst_3 {dimension_numbers = #tpu.dot_dimension_numbers<[1], [0], [0], [1], [0, 0, 1, 1], [], []>} : vector<8x32xf32>, vector<32x32xf32>, vector<8x32xf32> -> vector<8x32xf32>
    %15 = vector.extract_strided_slice %1 {offsets = [0, 2], sizes = [8, 1], strides = [1, 1]} : vector<8x4xi32> to vector<8x1xi32>
    %16 = vector.broadcast %15 : vector<8x1xi32> to vector<8x32xi32>
    %17 = arith.cmpi eq, %16, %2 : vector<8x32xi32>
    %18 = arith.extui %17 : vector<8x32xi1> to vector<8x32xi32>
    %19 = arith.sitofp %18 : vector<8x32xi32> to vector<8x32xf32>
    %cst_4 = arith.constant dense<0.000000e+00> : vector<8x32xf32>
    %20 = tpu.matmul %19, %0, %cst_4 {dimension_numbers = #tpu.dot_dimension_numbers<[1], [0], [0], [1], [0, 0, 1, 1], [], []>} : vector<8x32xf32>, vector<32x32xf32>, vector<8x32xf32> -> vector<8x32xf32>
    %21 = vector.extract_strided_slice %1 {offsets = [0, 3], sizes = [8, 1], strides = [1, 1]} : vector<8x4xi32> to vector<8x1xi32>
    %22 = vector.broadcast %21 : vector<8x1xi32> to vector<8x32xi32>
    %23 = arith.cmpi eq, %22, %2 : vector<8x32xi32>
    %24 = arith.extui %23 : vector<8x32xi1> to vector<8x32xi32>
    %25 = arith.sitofp %24 : vector<8x32xi32> to vector<8x32xf32>
    %cst_5 = arith.constant dense<0.000000e+00> : vector<8x32xf32>
    %26 = tpu.matmul %25, %0, %cst_5 {dimension_numbers = #tpu.dot_dimension_numbers<[1], [0], [0], [1], [0, 0, 1, 1], [], []>} : vector<8x32xf32>, vector<32x32xf32>, vector<8x32xf32> -> vector<8x32xf32>
    %27 = tpu.concatenate %8, %14, %20, %26 in 1 : vector<8x32xf32>, vector<8x32xf32>, vector<8x32xf32>, vector<8x32xf32> -> vector<8x128xf32>
    %c0_6 = arith.constant 0 : index
    %c0_7 = arith.constant 0 : index
    %28 = vector.load %arg3[%c0_6, %c0_7] : memref<8x128xf32, #tpu.memory_space<vmem>>, vector<8x128xf32>
    tpu.vector_store %arg3[%c0_6, %c0_7], %27 {strides = array<i32>} : memref<8x128xf32, #tpu.memory_space<vmem>>, vector<8x128xf32>,
    return
  }
  func.func @transform_0(%arg0: i32) -> (i32, i32) {
    %c0_i32 = arith.constant 0 : i32
    %c0_i32_0 = arith.constant 0 : i32
    return %arg0, %c0_i32 : i32, i32
  }
  func.func @transform_1(%arg0: i32) -> (i32, i32) {
    %c0_i32 = arith.constant 0 : i32
    %c0_i32_0 = arith.constant 0 : i32
    %c0_i32_1 = arith.constant 0 : i32
    return %c0_i32, %c0_i32_0 : i32, i32
  }
  func.func @transform_2(%arg0: i32) -> (i32, i32) {
    %c0_i32 = arith.constant 0 : i32
    %c0_i32_0 = arith.constant 0 : i32
    return %arg0, %c0_i32 : i32, i32
  }
}

</mosaic_0001>

<llo_original>
// kernel: tpu_custom_call.1
$region0: #{tpu_custom_call.1}
  #allocation0 [shape = 'u32[]', space=smem, size = 0x4, offset = 0x4, fixed_abs, tag = 'smem constant byte address 0x4 - core index']
  #allocation1 [shape = 'u32[144,128]{1,0:T(1,128)}', space=vmem, size = 0x12000, scoped, tag = 'internal scratch']
  %s0 = inlined_call_operand.vmem [shape: s32[8,4], index: 0, kind: input, shape index: {}]
  %s1 = inlined_call_operand.hbm [shape: f32[32,32], index: 1, kind: input, shape index: {}]
  %s2 = inlined_call_operand.hbm [shape: f32[8,128], index: 2, kind: output, shape index: {}]
  %s3 = sld [smem:[#allocation0]]
  $region22: #{tpu_custom_call.1} parent=0
    _
  %s5 = ssub.s32 1, %s3
  %s6 = scalar_select 0, %s5, %s3
  $region1: #{tpu_custom_call.1} parent=0
    #allocation2 [shape = 'u8[16384]{0}', space=vmem, size = 0x4000, scoped, tag = 'input window, operand 1, single buffered']
    #allocation3 [shape = 's32[1]{0}', space=sflag, size = 0x4, scoped, tag = 'scoped memory for tpu_custom_call.1']
    #allocation4 [shape = 's32[1]{0}', space=sflag, size = 0x4, scoped, tag = 'scoped memory for tpu_custom_call.1']
    #allocation5 [shape = 'u8[4096]{0}', space=vmem, size = 0x1000, scoped, tag = 'output window, operand 0, single buffered']
    %7 = vsyncpa [#allocation3], 0
    %8 = vsyncpa [#allocation4], 0
    // Predicated region
    $region2: #{tpu_custom_call.1} parent=1 // pred_check
      _
    $region3: #{tpu_custom_call.1} parent=1 // pred_check_branch
      %10 = sbr.rel (0) target = $region5
    $region4: #{tpu_custom_call.1} parent=1 // pred_region
      _
    $region5: #{tpu_custom_call.1} parent=1 // pred_fallthru
      _
    // Predicated region
    $region6: #{tpu_custom_call.1} parent=1 // pred_check
      _
    $region7: #{tpu_custom_call.1} parent=1 // pred_check_branch
      %12 = sbr.rel (0) target = $region9
    $region8: #{tpu_custom_call.1} parent=1 // pred_region
      %s14 = ssub.s32 512, 512
      %15 = vsyncadd [#allocation3], %s14
      %s16 = sshll.u32 [#allocation2], 4
      %s17 = int_to_ptr.vmem [resolvable:$true] %s16
      %22 = dma.hbm_to_vmem [thread:$0]  %s1, 512, %s17, [#allocation3], 128, 128, 8
    $region9: #{tpu_custom_call.1} parent=1 // pred_fallthru
      _
    // Predicated region
    $region10: #{tpu_custom_call.1} parent=1 // pred_check
      _
    $region11: #{tpu_custom_call.1} parent=1 // pred_check_branch
      %24 = sbr.rel (0) target = $region13
    $region12: #{tpu_custom_call.1} parent=1 // pred_region
      %25 = dma.done [#allocation3], 512
    $region13: #{tpu_custom_call.1} parent=1 // pred_fallthru
      _
    %v26 = vld [vmem:[#allocation2] sm:$0xff]
    %v27 = vld [vmem:[#allocation2 + $0x8] sm:$0xff]
    %v28 = vld [vmem:[#allocation2 + $0x10] sm:$0xff]
    %v29 = vld [vmem:[#allocation2 + $0x18] sm:$0xff]
    %v30 = vld [vmem:[%s0] sm:$0xff]
    %v31 = vlaneseq
    %v32 = vand.u32 %v31, 127
    %33 = vset.pattern.permute.xlu0 0
    %34 = vperm.xlu0 %33, %v30
    %v35 = vpop.permute.xlu0 %34
    %vm36 = vcmp.eq.s32.totalorder %v35, %v32
    %v37 = vsel %vm36, 1, 0
    %v38 = vcvt.s32.f32 %v37
    %vm39 = vcmask 261120
    %v41 = vsel %vm39, %v38, 0
    %43 = vmatprep.subr.mxu0 0.0
    %44 = vmatpush1.msra.mxu0 %v26
    %45 = vmatprep.subr.mxu0 0.0
    %46 = vmatpush1.msra.mxu0 %v27
    %47 = vmatprep.subr.mxu0 0.0
    %48 = vmatpush1.msra.mxu0 %v28
    %49 = vmatprep.subr.mxu0 0.0
    %50 = vmatpush1.msra.mxu0 %v29
    %51 = vmatprep.subr.mxu0 0.0
    %52 = vmatpush1.msra.mxu0 0.0
    %53 = vmatprep.subr.mxu0 0.0
    %54 = vmatpush1.msra.mxu0 0.0
    %55 = vmatprep.subr.mxu0 0.0
    %56 = vmatpush1.msra.mxu0 0.0
    %57 = vmatprep.subr.mxu0 0.0
    %58 = vmatpush1.msra.mxu0 0.0
    %59 = vmatprep.subr.mxu0 0.0
    %60 = vmatpush1.msra.mxu0 0.0
    %61 = vmatprep.subr.mxu0 0.0
    %62 = vmatpush1.msra.mxu0 0.0
    %63 = vmatprep.subr.mxu0 0.0
    %64 = vmatpush1.msra.mxu0 0.0
    %65 = vmatprep.subr.mxu0 0.0
    %66 = vmatpush1.msra.mxu0 0.0
    %67 = vmatprep.subr.mxu0 0.0
    %68 = vmatpush1.msra.mxu0 0.0
    %69 = vmatprep.subr.mxu0 0.0
    %70 = vmatpush1.msra.mxu0 0.0
    %71 = vmatprep.subr.mxu0 0.0
    %72 = vmatpush1.msra.mxu0 0.0
    %73 = vmatprep.subr.mxu0 0.0
    %74 = vmatpush1.msra.mxu0 0.0
    %75 = vmatprep.subr.mxu0 0.0
    %76 = vmatpush1.msra.mxu0 0.0
    %77 = vmatprep.subr.mxu0 0.0
    %78 = vmatpush1.msra.mxu0 0.0
    %79 = vmatprep.subr.mxu0 0.0
    %80 = vmatpush1.msra.mxu0 0.0
    %81 = vmatprep.subr.mxu0 0.0
    %82 = vmatpush1.msra.mxu0 0.0
    %83 = vmatprep.subr.mxu0 0.0
    %84 = vmatpush1.msra.mxu0 0.0
    %85 = vmatprep.subr.mxu0 0.0
    %86 = vmatpush1.msra.mxu0 0.0
    %87 = vmatprep.subr.mxu0 0.0
    %88 = vmatpush1.msra.mxu0 0.0
    %89 = vmatprep.subr.mxu0 0.0
    %90 = vmatpush1.msra.mxu0 0.0
    %91 = vmatprep.subr.mxu0 0.0
    %92 = vmatpush1.msra.mxu0 0.0
    %93 = vmatprep.subr.mxu0 0.0
    %94 = vmatpush1.msra.mxu0 0.0
    %95 = vmatprep.subr.mxu0 0.0
    %96 = vmatpush1.msra.mxu0 0.0
    %97 = vmatprep.subr.mxu0 0.0
    %98 = vmatpush1.msra.mxu0 0.0
    %99 = vmatprep.subr.mxu0 0.0
    %100 = vmatpush1.msra.mxu0 0.0
    %101 = vmatprep.subr.mxu0 0.0
    %102 = vmatpush1.msra.mxu0 0.0
    %103 = vmatprep.subr.mxu0 0.0
    %104 = vmatpush1.msra.mxu0 0.0
    %105 = vmatprep.subr.mxu0 0.0
    %106 = vmatpush1.msra.mxu0 0.0
    %107 = vmatprep.mubr.f32.mxu0 0.0
    %108 = vmatmul.mubr.f32.gmra.mrb[0].mxu0 %v41
    %v109 = vpop.f32.mrb[0].mxu0
    %v110 = vadd.f32 0.0, %v109
    %v111 = vpop.f32.mrb[0].mxu0
    %112 = vdwg.mxu0
    %113 = vset.pattern.permute.xlu0 1
    %114 = vperm.xlu0 %113, %v30
    %v115 = vpop.permute.xlu0 %114
    %vm116 = vcmp.eq.s32.totalorder %v115, %v32
    %v117 = vsel %vm116, 1, 0
    %v118 = vcvt.s32.f32 %v117
    %v120 = vsel %vm39, %v118, 0
    %122 = vmatprep.subr.mxu0 0.0
    %123 = vmatpush1.msra.mxu0 %v26
    %124 = vmatprep.subr.mxu0 0.0
    %125 = vmatpush1.msra.mxu0 %v27
    %126 = vmatprep.subr.mxu0 0.0
    %127 = vmatpush1.msra.mxu0 %v28
    %128 = vmatprep.subr.mxu0 0.0
    %129 = vmatpush1.msra.mxu0 %v29
    %130 = vmatprep.subr.mxu0 0.0
    %131 = vmatpush1.msra.mxu0 0.0
    %132 = vmatprep.subr.mxu0 0.0
    %133 = vmatpush1.msra.mxu0 0.0
    %134 = vmatprep.subr.mxu0 0.0
    %135 = vmatpush1.msra.mxu0 0.0
    %136 = vmatprep.subr.mxu0 0.0
    %137 = vmatpush1.msra.mxu0 0.0
    %138 = vmatprep.subr.mxu0 0.0
    %139 = vmatpush1.msra.mxu0 0.0
    %140 = vmatprep.subr.mxu0 0.0
    %141 = vmatpush1.msra.mxu0 0.0
    %142 = vmatprep.subr.mxu0 0.0
    %143 = vmatpush1.msra.mxu0 0.0
    %144 = vmatprep.subr.mxu0 0.0
    %145 = vmatpush1.msra.mxu0 0.0
    %146 = vmatprep.subr.mxu0 0.0
    %147 = vmatpush1.msra.mxu0 0.0
    %148 = vmatprep.subr.mxu0 0.0
    %149 = vmatpush1.msra.mxu0 0.0
    %150 = vmatprep.subr.mxu0 0.0
    %151 = vmatpush1.msra.mxu0 0.0
    %152 = vmatprep.subr.mxu0 0.0
    %153 = vmatpush1.msra.mxu0 0.0
    %154 = vmatprep.subr.mxu0 0.0
    %155 = vmatpush1.msra.mxu0 0.0
    %156 = vmatprep.subr.mxu0 0.0
    %157 = vmatpush1.msra.mxu0 0.0
    %158 = vmatprep.subr.mxu0 0.0
    %159 = vmatpush1.msra.mxu0 0.0
    %160 = vmatprep.subr.mxu0 0.0
    %161 = vmatpush1.msra.mxu0 0.0
    %162 = vmatprep.subr.mxu0 0.0
    %163 = vmatpush1.msra.mxu0 0.0
    %164 = vmatprep.subr.mxu0 0.0
    %165 = vmatpush1.msra.mxu0 0.0
    %166 = vmatprep.subr.mxu0 0.0
    %167 = vmatpush1.msra.mxu0 0.0
    %168 = vmatprep.subr.mxu0 0.0
    %169 = vmatpush1.msra.mxu0 0.0
    %170 = vmatprep.subr.mxu0 0.0
    %171 = vmatpush1.msra.mxu0 0.0
    %172 = vmatprep.subr.mxu0 0.0
    %173 = vmatpush1.msra.mxu0 0.0
    %174 = vmatprep.subr.mxu0 0.0
    %175 = vmatpush1.msra.mxu0 0.0
    %176 = vmatprep.subr.mxu0 0.0
    %177 = vmatpush1.msra.mxu0 0.0
    %178 = vmatprep.subr.mxu0 0.0
    %179 = vmatpush1.msra.mxu0 0.0
    %180 = vmatprep.subr.mxu0 0.0
    %181 = vmatpush1.msra.mxu0 0.0
    %182 = vmatprep.subr.mxu0 0.0
    %183 = vmatpush1.msra.mxu0 0.0
    %184 = vmatprep.subr.mxu0 0.0
    %185 = vmatpush1.msra.mxu0 0.0
    %186 = vmatprep.mubr.f32.mxu0 0.0
    %187 = vmatmul.mubr.f32.gmra.mrb[0].mxu0 %v120
    %v188 = vpop.f32.mrb[0].mxu0
    %v189 = vadd.f32 0.0, %v188
    %v190 = vpop.f32.mrb[0].mxu0
    %191 = vdwg.mxu0
    %192 = vset.pattern.permute.xlu0 2
    %193 = vperm.xlu0 %192, %v30
    %v194 = vpop.permute.xlu0 %193
    %vm195 = vcmp.eq.s32.totalorder %v194, %v32
    %v196 = vsel %vm195, 1, 0
    %v197 = vcvt.s32.f32 %v196
    %v199 = vsel %vm39, %v197, 0
    %201 = vmatprep.subr.mxu0 0.0
    %202 = vmatpush1.msra.mxu0 %v26
    %203 = vmatprep.subr.mxu0 0.0
    %204 = vmatpush1.msra.mxu0 %v27
    %205 = vmatprep.subr.mxu0 0.0
    %206 = vmatpush1.msra.mxu0 %v28
    %207 = vmatprep.subr.mxu0 0.0
    %208 = vmatpush1.msra.mxu0 %v29
    %209 = vmatprep.subr.mxu0 0.0
    %210 = vmatpush1.msra.mxu0 0.0
    %211 = vmatprep.subr.mxu0 0.0
    %212 = vmatpush1.msra.mxu0 0.0
    %213 = vmatprep.subr.mxu0 0.0
    %214 = vmatpush1.msra.mxu0 0.0
    %215 = vmatprep.subr.mxu0 0.0
    %216 = vmatpush1.msra.mxu0 0.0
    %217 = vmatprep.subr.mxu0 0.0
    %218 = vmatpush1.msra.mxu0 0.0
    %219 = vmatprep.subr.mxu0 0.0
    %220 = vmatpush1.msra.mxu0 0.0
    %221 = vmatprep.subr.mxu0 0.0
    %222 = vmatpush1.msra.mxu0 0.0
    %223 = vmatprep.subr.mxu0 0.0
    %224 = vmatpush1.msra.mxu0 0.0
    %225 = vmatprep.subr.mxu0 0.0
    %226 = vmatpush1.msra.mxu0 0.0
    %227 = vmatprep.subr.mxu0 0.0
    %228 = vmatpush1.msra.mxu0 0.0
    %229 = vmatprep.subr.mxu0 0.0
    %230 = vmatpush1.msra.mxu0 0.0
    %231 = vmatprep.subr.mxu0 0.0
    %232 = vmatpush1.msra.mxu0 0.0
    %233 = vmatprep.subr.mxu0 0.0
    %234 = vmatpush1.msra.mxu0 0.0
    %235 = vmatprep.subr.mxu0 0.0
    %236 = vmatpush1.msra.mxu0 0.0
    %237 = vmatprep.subr.mxu0 0.0
    %238 = vmatpush1.msra.mxu0 0.0
    %239 = vmatprep.subr.mxu0 0.0
    %240 = vmatpush1.msra.mxu0 0.0
    %241 = vmatprep.subr.mxu0 0.0
    %242 = vmatpush1.msra.mxu0 0.0
    %243 = vmatprep.subr.mxu0 0.0
    %244 = vmatpush1.msra.mxu0 0.0
    %245 = vmatprep.subr.mxu0 0.0
    %246 = vmatpush1.msra.mxu0 0.0
    %247 = vmatprep.subr.mxu0 0.0
    %248 = vmatpush1.msra.mxu0 0.0
    %249 = vmatprep.subr.mxu0 0.0
    %250 = vmatpush1.msra.mxu0 0.0
    %251 = vmatprep.subr.mxu0 0.0
    %252 = vmatpush1.msra.mxu0 0.0
    %253 = vmatprep.subr.mxu0 0.0
    %254 = vmatpush1.msra.mxu0 0.0
    %255 = vmatprep.subr.mxu0 0.0
    %256 = vmatpush1.msra.mxu0 0.0
    %257 = vmatprep.subr.mxu0 0.0
    %258 = vmatpush1.msra.mxu0 0.0
    %259 = vmatprep.subr.mxu0 0.0
    %260 = vmatpush1.msra.mxu0 0.0
    %261 = vmatprep.subr.mxu0 0.0
    %262 = vmatpush1.msra.mxu0 0.0
    %263 = vmatprep.subr.mxu0 0.0
    %264 = vmatpush1.msra.mxu0 0.0
    %265 = vmatprep.mubr.f32.mxu0 0.0
    %266 = vmatmul.mubr.f32.gmra.mrb[0].mxu0 %v199
    %v267 = vpop.f32.mrb[0].mxu0
    %v268 = vadd.f32 0.0, %v267
    %v269 = vpop.f32.mrb[0].mxu0
    %270 = vdwg.mxu0
    %271 = vset.pattern.permute.xlu0 3
    %272 = vperm.xlu0 %271, %v30
    %v273 = vpop.permute.xlu0 %272
    %vm274 = vcmp.eq.s32.totalorder %v273, %v32
    %v275 = vsel %vm274, 1, 0
    %v276 = vcvt.s32.f32 %v275
    %v278 = vsel %vm39, %v276, 0
    %280 = vmatprep.subr.mxu0 0.0
    %281 = vmatpush1.msra.mxu0 %v26
    %282 = vmatprep.subr.mxu0 0.0
    %283 = vmatpush1.msra.mxu0 %v27
    %284 = vmatprep.subr.mxu0 0.0
    %285 = vmatpush1.msra.mxu0 %v28
    %286 = vmatprep.subr.mxu0 0.0
    %287 = vmatpush1.msra.mxu0 %v29
    %288 = vmatprep.subr.mxu0 0.0
    %289 = vmatpush1.msra.mxu0 0.0
    %290 = vmatprep.subr.mxu0 0.0
    %291 = vmatpush1.msra.mxu0 0.0
    %292 = vmatprep.subr.mxu0 0.0
    %293 = vmatpush1.msra.mxu0 0.0
    %294 = vmatprep.subr.mxu0 0.0
    %295 = vmatpush1.msra.mxu0 0.0
    %296 = vmatprep.subr.mxu0 0.0
    %297 = vmatpush1.msra.mxu0 0.0
    %298 = vmatprep.subr.mxu0 0.0
    %299 = vmatpush1.msra.mxu0 0.0
    %300 = vmatprep.subr.mxu0 0.0
    %301 = vmatpush1.msra.mxu0 0.0
    %302 = vmatprep.subr.mxu0 0.0
    %303 = vmatpush1.msra.mxu0 0.0
    %304 = vmatprep.subr.mxu0 0.0
    %305 = vmatpush1.msra.mxu0 0.0
    %306 = vmatprep.subr.mxu0 0.0
    %307 = vmatpush1.msra.mxu0 0.0
    %308 = vmatprep.subr.mxu0 0.0
    %309 = vmatpush1.msra.mxu0 0.0
    %310 = vmatprep.subr.mxu0 0.0
    %311 = vmatpush1.msra.mxu0 0.0
    %312 = vmatprep.subr.mxu0 0.0
    %313 = vmatpush1.msra.mxu0 0.0
    %314 = vmatprep.subr.mxu0 0.0
    %315 = vmatpush1.msra.mxu0 0.0
    %316 = vmatprep.subr.mxu0 0.0
    %317 = vmatpush1.msra.mxu0 0.0
    %318 = vmatprep.subr.mxu0 0.0
    %319 = vmatpush1.msra.mxu0 0.0
    %320 = vmatprep.subr.mxu0 0.0
    %321 = vmatpush1.msra.mxu0 0.0
    %322 = vmatprep.subr.mxu0 0.0
    %323 = vmatpush1.msra.mxu0 0.0
    %324 = vmatprep.subr.mxu0 0.0
    %325 = vmatpush1.msra.mxu0 0.0
    %326 = vmatprep.subr.mxu0 0.0
    %327 = vmatpush1.msra.mxu0 0.0
    %328 = vmatprep.subr.mxu0 0.0
    %329 = vmatpush1.msra.mxu0 0.0
    %330 = vmatprep.subr.mxu0 0.0
    %331 = vmatpush1.msra.mxu0 0.0
    %332 = vmatprep.subr.mxu0 0.0
    %333 = vmatpush1.msra.mxu0 0.0
    %334 = vmatprep.subr.mxu0 0.0
    %335 = vmatpush1.msra.mxu0 0.0
    %336 = vmatprep.subr.mxu0 0.0
    %337 = vmatpush1.msra.mxu0 0.0
    %338 = vmatprep.subr.mxu0 0.0
    %339 = vmatpush1.msra.mxu0 0.0
    %340 = vmatprep.subr.mxu0 0.0
    %341 = vmatpush1.msra.mxu0 0.0
    %342 = vmatprep.subr.mxu0 0.0
    %343 = vmatpush1.msra.mxu0 0.0
    %344 = vmatprep.mubr.f32.mxu0 0.0
    %345 = vmatmul.mubr.f32.gmra.mrb[0].mxu0 %v278
    %v346 = vpop.f32.mrb[0].mxu0
    %v347 = vadd.f32 0.0, %v346
    %v348 = vpop.f32.mrb[0].mxu0
    %349 = vdwg.mxu0
    %351 = vrot.lane.b32.xlu0 %v189, 32
    %v352 = vpop.permute.xlu0 %351
    %355 = vrot.lane.b32.xlu0 %v268, 64
    %v356 = vpop.permute.xlu0 %355
    %359 = vrot.lane.b32.xlu0 %v347, 96
    %v360 = vpop.permute.xlu0 %359
    %v362 = vsel %vm39, %v110, %v352
    %vm363 = vcmask 523264
    %v364 = vsel %vm363, %v362, %v356
    %vm365 = vcmask 785408
    %v366 = vsel %vm365, %v364, %v360
    %367 = vst [vmem:[#allocation5] sm:$0xff] %v366
    // Predicated region
    $region14: #{tpu_custom_call.1} parent=1 // pred_check
      _
    $region15: #{tpu_custom_call.1} parent=1 // pred_check_branch
      %369 = sbr.rel (0) target = $region17
    $region16: #{tpu_custom_call.1} parent=1 // pred_region
      %s371 = ssub.s32 128, 128
      %372 = vsyncadd [#allocation4], %s371
      %s374 = sshll.u32 [#allocation5], 4
      %s375 = int_to_ptr.vmem [resolvable:$true] %s374
      %377 = dma.vmem_to_hbm [thread:$0]  %s375, 128, %s2, [#allocation4]
    $region17: #{tpu_custom_call.1} parent=1 // pred_fallthru
      _
    // Predicated region
    $region18: #{tpu_custom_call.1} parent=1 // pred_check
      _
    $region19: #{tpu_custom_call.1} parent=1 // pred_check_branch
      %379 = sbr.rel (0) target = $region21
    $region20: #{tpu_custom_call.1} parent=1 // pred_region
      %380 = dma.done [#allocation4], 128
    $region21: #{tpu_custom_call.1} parent=1 // pred_fallthru
      _
    %381 = vsyncpa [#allocation3], 1
    %382 = vsyncpa [#allocation4], 1

</llo_original>
